<compile_context>
chip_gen: v7x
topology: tpu7x:2x2x1
jax: 0.10.0
libtpu: 0.0.40
codegen_flags: <defaults>
</compile_context>

<pallas_src>
import math

import jax
import jax.numpy as jnp
from jax.experimental import pallas as pl
from jax.experimental.pallas import tpu as pltpu

# Geometry implied by the module's forward (view(-1, C, 11, 1, 1)):
D_IN, H_IN, W_IN = 12, 4, 4          # input observation is (B, 1, 12, 4, 4)
K_D, K_H, K_W = 2, 4, 4              # Conv3d kernel size
D_OUT = D_IN - K_D + 1               # 11 depth output positions
N_FLAT_IN = D_IN * H_IN * W_IN       # 192 flattened input features
BN_EPS = 1e-5
LANE = 128


def _round_up(n, m):
    return ((n + m - 1) // m) * m


# --------------------------------------------------------------------------
# Fused kernel: conv-as-matmul -> ReLU -> fc(+bnc folded) -> ReLU
#               -> fc2(+bn1 folded) -> ReLU -> fc3  (no final activation)
# --------------------------------------------------------------------------
def _convnet_kernel(x_ref, w0_ref, w1_ref, w2_ref, w3_ref, b_ref, o_ref):
    cdt = w1_ref.dtype                       # compute (matmul-operand) dtype
    b_all = b_ref[...]                       # (8, Wb) f32 packed bias rows

    def bias(k, width):
        return b_all[k:k + 1, :width]        # static slice -> (1, width) view

    # Conv3d as one dense matmul + bias + ReLU (bnc is folded into w1/b1).
    h = jnp.dot(x_ref[...], w0_ref[...], preferred_element_type=jnp.float32)
    h = jnp.maximum(h + bias(0, h.shape[-1]), 0.0)
    # fc (bnc affine pre-folded into its rows) -> ReLU
    h = jnp.dot(h.astype(cdt), w1_ref[...], preferred_element_type=jnp.float32)
    h = jnp.maximum(h + bias(1, h.shape[-1]), 0.0)
    # fc2 (bn1 affine pre-folded into its columns) -> ReLU
    h = jnp.dot(h.astype(cdt), w2_ref[...], preferred_element_type=jnp.float32)
    h = jnp.maximum(h + bias(2, h.shape[-1]), 0.0)
    # fc3: raw Q-values, NO final ReLU.
    h = jnp.dot(h.astype(cdt), w3_ref[...], preferred_element_type=jnp.float32)
    o_ref[...] = (h + bias(3, h.shape[-1])).astype(o_ref.dtype)


# --------------------------------------------------------------------------
# Parameter preparation (done once, outside the kernel, in f32)
# --------------------------------------------------------------------------
def _conv_as_dense(conv_w):
    """(C,1,2,4,4) Conv3d weight -> dense (192, C*11) matrix on flattened input."""
    C = conv_w.shape[0]
    assert conv_w.shape == (C, 1, K_D, H_IN, W_IN)
    wflat = conv_w.reshape(C, K_D * H_IN * W_IN)      # (C, 32) in (kd, h, w) order
    dense = jnp.zeros((N_FLAT_IN, C * D_OUT), jnp.float32)
    hw = H_IN * W_IN
    for c in range(C):
        for d in range(D_OUT):
            col = jnp.zeros((N_FLAT_IN,), jnp.float32)
            col = col.at[d * hw:(d + K_D) * hw].set(wflat[c])
            dense = dense.at[:, c * D_OUT + d].set(col)
    return dense


def _pad2(a, rows, cols, fill=0.0):
    out = jnp.full((rows, cols), fill, a.dtype)
    return out.at[:a.shape[0], :a.shape[1]].set(a)


def prepare_kernel_params(p, *, compute_dtype=jnp.bfloat16):
    """PyTorch-layout params -> folded, padded, lane-dense kernel operands.

    All BN folding / padding is computed in f32; only the final matmul
    operands are cast to `compute_dtype` (bf16 by default for the MXU).
    """
    C = p["conv_w"].shape[0]
    n_fc = p["fc_w"].shape[0]
    n_act = p["fc3_w"].shape[0]
    f0 = C * D_OUT                                   # 33 flattened conv features
    f0p = _round_up(max(f0, LANE), LANE)             # -> 128 (lane-dense)
    n_outp = _round_up(max(n_act, LANE), LANE)       # -> 128 (lane-dense)
    assert n_fc % LANE == 0, "n_fc must be a multiple of 128 for this kernel"

    # Layer 0: conv as dense matmul; zero-padded columns -> padded lanes stay 0.
    w0 = _pad2(_conv_as_dense(p["conv_w"]), N_FLAT_IN, f0p)
    b0 = jnp.zeros((f0p,), jnp.float32).at[:f0].set(jnp.repeat(p["conv_b"], D_OUT))

    # bnc (eval) affine, broadcast over the 11 depth positions, then FOLDED
    # into fc's weight (row-scale) and bias (shift) — no affine in-kernel.
    s_c = p["bnc_gamma"] / jnp.sqrt(p["bnc_var"] + BN_EPS)
    t_c = p["bnc_beta"] - p["bnc_mean"] * s_c
    s0 = jnp.repeat(s_c, D_OUT)                       # (f0,)
    t0 = jnp.repeat(t_c, D_OUT)                       # (f0,)
    w1_raw = p["fc_w"].T                              # (f0, n_fc)
    w1 = _pad2(s0[:, None] * w1_raw, f0p, n_fc)       # rows 33..127 stay zero
    b1 = p["fc_b"] + t0 @ w1_raw

    # bn1 (eval) affine FOLDED into fc2's weight (column-scale) and bias.
    s1 = p["bn1_gamma"] / jnp.sqrt(p["bn1_var"] + BN_EPS)
    t1 = p["bn1_beta"] - p["bn1_mean"] * s1
    w2 = p["fc2_w"].T * s1[None, :]
    b2 = p["fc2_b"] * s1 + t1

    # fc3: pad the 4 action columns to 128 lanes (zeros) for a lane-dense store.
    w3 = _pad2(p["fc3_w"].T, n_fc, n_outp)
    b3 = jnp.zeros((n_outp,), jnp.float32).at[:n_act].set(p["fc3_b"])

    # Pack the four bias rows into one (8, Wb) f32 operand (rows 4..7 unused).
    wb = max(f0p, n_fc, n_outp)
    bias_pack = jnp.zeros((8, wb), jnp.float32)
    bias_pack = bias_pack.at[0, :f0p].set(b0)
    bias_pack = bias_pack.at[1, :n_fc].set(b1)
    bias_pack = bias_pack.at[2, :n_fc].set(b2)
    bias_pack = bias_pack.at[3, :n_outp].set(b3)

    cast = lambda a: a.astype(compute_dtype)
    return dict(w0=cast(w0), w1=cast(w1), w2=cast(w2), w3=cast(w3),
                bias=bias_pack, n_actions=n_act)


# --------------------------------------------------------------------------
# Wrapper
# --------------------------------------------------------------------------
def convnet_forward(x, kp, *, block_batch=1024):
    """x: (B, 1, 12, 4, 4) float -> (B, n_actions) f32 Q-values."""
    B = x.shape[0]
    cdt = kp["w0"].dtype
    x_flat = x.reshape(B, -1).astype(cdt)
    assert x_flat.shape[1] == N_FLAT_IN

    tb = min(block_batch, _round_up(B, 8))
    bpad = _round_up(B, tb)
    # v7x megacore: keep >=2 "parallel" grid steps when there is enough work,
    # so the second TensorCore is not idled by a single-step grid.
    if bpad // tb < 2 and bpad >= 16:
        tb = _round_up((bpad + 1) // 2, 8)
        bpad = _round_up(B, tb)
    if bpad != B:
        x_flat = jnp.pad(x_flat, ((0, bpad - B), (0, 0)))

    weight_names = ("w0", "w1", "w2", "w3", "bias")
    weights = [kp[k] for k in weight_names]
    n_outp = kp["w3"].shape[1]

    def const_spec(a):
        # Constant index_map -> operand block stays VMEM-resident across steps.
        return pl.BlockSpec(a.shape, lambda i: (0,) * a.ndim)

    out = pl.pallas_call(
        _convnet_kernel,
        out_shape=jax.ShapeDtypeStruct((bpad, n_outp), jnp.float32),
        grid_spec=pltpu.PrefetchScalarGridSpec(
            num_scalar_prefetch=0,
            grid=(bpad // tb,),
            in_specs=[pl.BlockSpec((tb, N_FLAT_IN), lambda i: (i, 0))]
                     + [const_spec(a) for a in weights],
            out_specs=pl.BlockSpec((tb, n_outp), lambda i: (i, 0)),
        ),
        compiler_params=pltpu.CompilerParams(
            dimension_semantics=("parallel",)),
    )(x_flat, *weights)

    return out[:B, :kp["n_actions"]]


# --------------------------------------------------------------------------
# Deterministic init mirroring the PyTorch module's parameter shapes
# --------------------------------------------------------------------------
def init_params(key, out_channels=3, n_fc=128, n_actions=4):
    ks = jax.random.split(key, 16)

    def unif(k, shape, fan_in):
        bound = 1.0 / math.sqrt(fan_in)
        return jax.random.uniform(k, shape, jnp.float32, -bound, bound)

    fan_conv = 1 * K_D * K_H * K_W
    f0 = out_channels * D_OUT
    return {
        "conv_w": unif(ks[0], (out_channels, 1, K_D, K_H, K_W), fan_conv),
        "conv_b": unif(ks[1], (out_channels,), fan_conv),
        "bnc_gamma": jax.random.uniform(ks[2], (out_channels,), jnp.float32, 0.5, 1.5),
        "bnc_beta": 0.1 * jax.random.normal(ks[3], (out_channels,), jnp.float32),
        "bnc_mean": 0.1 * jax.random.normal(ks[4], (out_channels,), jnp.float32),
        "bnc_var": jax.random.uniform(ks[5], (out_channels,), jnp.float32, 0.5, 1.5),
        "fc_w": unif(ks[6], (n_fc, f0), f0),
        "fc_b": unif(ks[7], (n_fc,), f0),
        "bn1_gamma": jax.random.uniform(ks[8], (n_fc,), jnp.float32, 0.5, 1.5),
        "bn1_beta": 0.1 * jax.random.normal(ks[9], (n_fc,), jnp.float32),
        "bn1_mean": 0.1 * jax.random.normal(ks[10], (n_fc,), jnp.float32),
        "bn1_var": jax.random.uniform(ks[11], (n_fc,), jnp.float32, 0.5, 1.5),
        "fc2_w": unif(ks[12], (n_fc, n_fc), n_fc),
        "fc2_b": unif(ks[13], (n_fc,), n_fc),
        "fc3_w": unif(ks[14], (n_actions, n_fc), n_fc),
        "fc3_b": unif(ks[15], (n_actions,), n_fc),
    }


# --------------------------------------------------------------------------
# Pure-JAX f32 reference (eval-mode BN), mirroring the PyTorch forward exactly
# --------------------------------------------------------------------------
def reference_forward(x, p):
    B = x.shape[0]
    # Conv3d (VALID, stride 1): kernel HxW == input HxW -> 11 full-patch dots.
    patches = jnp.stack([x[:, 0, d:d + K_D] for d in range(D_OUT)], axis=1)  # (B,11,2,4,4)
    y = jnp.einsum("bdkhw,ckhw->bcd", patches, p["conv_w"][:, 0])
    y = y + p["conv_b"][None, :, None]
    y = jnp.maximum(y, 0.0)                                   # relu(conv)
    # bnc (eval mode)
    s = p["bnc_gamma"] / jnp.sqrt(p["bnc_var"] + BN_EPS)
    y = (y - p["bnc_mean"][None, :, None]) * s[None, :, None] + p["bnc_beta"][None, :, None]
    y = y.reshape(B, -1)                                      # (B, 33), (c, d) order
    y = jnp.maximum(y @ p["fc_w"].T + p["fc_b"], 0.0)         # relu(fc)
    z = y @ p["fc2_w"].T + p["fc2_b"]
    s1 = p["bn1_gamma"] / jnp.sqrt(p["bn1_var"] + BN_EPS)
    z = (z - p["bn1_mean"]) * s1 + p["bn1_beta"]
    z = jnp.maximum(z, 0.0)                                   # relu(bn1(fc2))
    return z @ p["fc3_w"].T + p["fc3_b"]                      # fc3, no activation


if __name__ == "__main__":
    # Small, module-consistent DQN batch.  The wrapper splits it into 2
    # "parallel" grid steps so both v7x TensorCores get work.
    B = 64
    out_channels, n_fc, n_actions = 3, 128, 4

    key = jax.random.PRNGKey(0)
    k_x, k_p = jax.random.split(key)
    x = jax.random.normal(k_x, (B, 1, D_IN, H_IN, W_IN), jnp.float32)

    params = init_params(k_p, out_channels=out_channels, n_fc=n_fc, n_actions=n_actions)
    kparams = prepare_kernel_params(params)   # one-time BN folding / padding / bf16 cast

    out = convnet_forward(x, kparams)
    out = jax.block_until_ready(out)

    ref = reference_forward(x, params)
    assert out.shape == (B, n_actions)
    max_err = float(jnp.max(jnp.abs(out - ref)))
    # bf16 matmul operands with f32 accumulation: loosen tolerance vs the
    # pure-f32 reference (errors from a wrong fold/layout would be O(0.1-1)).
    assert jnp.allclose(out, ref, atol=3e-2, rtol=3e-2), f"max abs err {max_err}"
    print("KERNEL_OK")
</pallas_src>

<mosaic_0001>
module attributes {stable_mosaic.version = 11 : i64} {
  func.func @_convnet_kernel(%arg0: i32, %arg1: memref<32x192xbf16, #tpu.memory_space<vmem>>, %arg2: memref<192x128xbf16, #tpu.memory_space<vmem>>, %arg3: memref<128x128xbf16, #tpu.memory_space<vmem>>, %arg4: memref<128x128xbf16, #tpu.memory_space<vmem>>, %arg5: memref<128x128xbf16, #tpu.memory_space<vmem>>, %arg6: memref<8x128xf32, #tpu.memory_space<vmem>>, %arg7: memref<32x128xf32, #tpu.memory_space<vmem>>) attributes {dimension_semantics = [#tpu.dimension_semantics<parallel>], iteration_bounds = array<i64: 2>, scalar_prefetch = 0 : i64, scratch_operands = 0 : i64, tpu.core_type = #tpu.core_type<tc>, window_params = [{transform_indices = @transform_0, window_bounds = array<i64: 32, 192>}, {pipeline_mode = #tpu.pipeline_mode<synchronous>, transform_indices = @transform_1, window_bounds = array<i64: 192, 128>}, {pipeline_mode = #tpu.pipeline_mode<synchronous>, transform_indices = @transform_2, window_bounds = array<i64: 128, 128>}, {pipeline_mode = #tpu.pipeline_mode<synchronous>, transform_indices = @transform_3, window_bounds = array<i64: 128, 128>}, {pipeline_mode = #tpu.pipeline_mode<synchronous>, transform_indices = @transform_4, window_bounds = array<i64: 128, 128>}, {pipeline_mode = #tpu.pipeline_mode<synchronous>, transform_indices = @transform_5, window_bounds = array<i64: 8, 128>}, {transform_indices = @transform_6, window_bounds = array<i64: 32, 128>}]} {
    %c0 = arith.constant 0 : index
    %c0_0 = arith.constant 0 : index
    %0 = vector.load %arg6[%c0, %c0_0] : memref<8x128xf32, #tpu.memory_space<vmem>>, vector<8x128xf32>
    %c0_1 = arith.constant 0 : index
    %c0_2 = arith.constant 0 : index
    %1 = vector.load %arg1[%c0_1, %c0_2] : memref<32x192xbf16, #tpu.memory_space<vmem>>, vector<32x192xbf16>
    %c0_3 = arith.constant 0 : index
    %c0_4 = arith.constant 0 : index
    %2 = vector.load %arg2[%c0_3, %c0_4] : memref<192x128xbf16, #tpu.memory_space<vmem>>, vector<192x128xbf16>
    %cst = arith.constant dense<0.000000e+00> : vector<32x128xf32>
    %3 = tpu.matmul %1, %2, %cst {dimension_numbers = #tpu.dot_dimension_numbers<[1], [0], [0], [1], [0, 0, 1, 1], [], []>} : vector<32x192xbf16>, vector<192x128xbf16>, vector<32x128xf32> -> vector<32x128xf32>
    %4 = vector.extract_strided_slice %0 {offsets = [0, 0], sizes = [1, 128], strides = [1, 1]} : vector<8x128xf32> to vector<1x128xf32>
    %5 = vector.broadcast %4 : vector<1x128xf32> to vector<32x128xf32>
    %6 = arith.addf %3, %5 : vector<32x128xf32>
    %cst_5 = arith.constant 0.000000e+00 : f32
    %7 = vector.broadcast %cst_5 : f32 to vector<32x128xf32>
    %8 = arith.maximumf %6, %7 : vector<32x128xf32>
    %9 = arith.truncf %8 : vector<32x128xf32> to vector<32x128xbf16>
    %c0_6 = arith.constant 0 : index
    %c0_7 = arith.constant 0 : index
    %10 = vector.load %arg3[%c0_6, %c0_7] : memref<128x128xbf16, #tpu.memory_space<vmem>>, vector<128x128xbf16>
    %cst_8 = arith.constant dense<0.000000e+00> : vector<32x128xf32>
    %11 = tpu.matmul %9, %10, %cst_8 {dimension_numbers = #tpu.dot_dimension_numbers<[1], [0], [0], [1], [0, 0, 1, 1], [], []>} : vector<32x128xbf16>, vector<128x128xbf16>, vector<32x128xf32> -> vector<32x128xf32>
    %12 = vector.extract_strided_slice %0 {offsets = [1, 0], sizes = [1, 128], strides = [1, 1]} : vector<8x128xf32> to vector<1x128xf32>
    %13 = vector.broadcast %12 : vector<1x128xf32> to vector<32x128xf32>
    %14 = arith.addf %11, %13 : vector<32x128xf32>
    %cst_9 = arith.constant 0.000000e+00 : f32
    %15 = vector.broadcast %cst_9 : f32 to vector<32x128xf32>
    %16 = arith.maximumf %14, %15 : vector<32x128xf32>
    %17 = arith.truncf %16 : vector<32x128xf32> to vector<32x128xbf16>
    %c0_10 = arith.constant 0 : index
    %c0_11 = arith.constant 0 : index
    %18 = vector.load %arg4[%c0_10, %c0_11] : memref<128x128xbf16, #tpu.memory_space<vmem>>, vector<128x128xbf16>
    %cst_12 = arith.constant dense<0.000000e+00> : vector<32x128xf32>
    %19 = tpu.matmul %17, %18, %cst_12 {dimension_numbers = #tpu.dot_dimension_numbers<[1], [0], [0], [1], [0, 0, 1, 1], [], []>} : vector<32x128xbf16>, vector<128x128xbf16>, vector<32x128xf32> -> vector<32x128xf32>
    %20 = vector.extract_strided_slice %0 {offsets = [2, 0], sizes = [1, 128], strides = [1, 1]} : vector<8x128xf32> to vector<1x128xf32>
    %21 = vector.broadcast %20 : vector<1x128xf32> to vector<32x128xf32>
    %22 = arith.addf %19, %21 : vector<32x128xf32>
    %cst_13 = arith.constant 0.000000e+00 : f32
    %23 = vector.broadcast %cst_13 : f32 to vector<32x128xf32>
    %24 = arith.maximumf %22, %23 : vector<32x128xf32>
    %25 = arith.truncf %24 : vector<32x128xf32> to vector<32x128xbf16>
    %c0_14 = arith.constant 0 : index
    %c0_15 = arith.constant 0 : index
    %26 = vector.load %arg5[%c0_14, %c0_15] : memref<128x128xbf16, #tpu.memory_space<vmem>>, vector<128x128xbf16>
    %cst_16 = arith.constant dense<0.000000e+00> : vector<32x128xf32>
    %27 = tpu.matmul %25, %26, %cst_16 {dimension_numbers = #tpu.dot_dimension_numbers<[1], [0], [0], [1], [0, 0, 1, 1], [], []>} : vector<32x128xbf16>, vector<128x128xbf16>, vector<32x128xf32> -> vector<32x128xf32>
    %28 = vector.extract_strided_slice %0 {offsets = [3, 0], sizes = [1, 128], strides = [1, 1]} : vector<8x128xf32> to vector<1x128xf32>
    %29 = vector.broadcast %28 : vector<1x128xf32> to vector<32x128xf32>
    %30 = arith.addf %27, %29 : vector<32x128xf32>
    %c0_17 = arith.constant 0 : index
    %c0_18 = arith.constant 0 : index
    %31 = vector.load %arg7[%c0_17, %c0_18] : memref<32x128xf32, #tpu.memory_space<vmem>>, vector<32x128xf32>
    tpu.vector_store %arg7[%c0_17, %c0_18], %30 {strides = array<i32>} : memref<32x128xf32, #tpu.memory_space<vmem>>, vector<32x128xf32>,
    return
  }
  func.func @transform_0(%arg0: i32) -> (i32, i32) {
    %c0_i32 = arith.constant 0 : i32
    %c0_i32_0 = arith.constant 0 : i32
    return %arg0, %c0_i32 : i32, i32
  }
  func.func @transform_1(%arg0: i32) -> (i32, i32) {
    %c0_i32 = arith.constant 0 : i32
    %c0_i32_0 = arith.constant 0 : i32
    %c0_i32_1 = arith.constant 0 : i32
    return %c0_i32, %c0_i32_0 : i32, i32
  }
  func.func @transform_2(%arg0: i32) -> (i32, i32) {
    %c0_i32 = arith.constant 0 : i32
    %c0_i32_0 = arith.constant 0 : i32
    %c0_i32_1 = arith.constant 0 : i32
    return %c0_i32, %c0_i32_0 : i32, i32
  }
  func.func @transform_3(%arg0: i32) -> (i32, i32) {
    %c0_i32 = arith.constant 0 : i32
    %c0_i32_0 = arith.constant 0 : i32
    %c0_i32_1 = arith.constant 0 : i32
    return %c0_i32, %c0_i32_0 : i32, i32
  }
  func.func @transform_4(%arg0: i32) -> (i32, i32) {
    %c0_i32 = arith.constant 0 : i32
    %c0_i32_0 = arith.constant 0 : i32
    %c0_i32_1 = arith.constant 0 : i32
    return %c0_i32, %c0_i32_0 : i32, i32
  }
  func.func @transform_5(%arg0: i32) -> (i32, i32) {
    %c0_i32 = arith.constant 0 : i32
    %c0_i32_0 = arith.constant 0 : i32
    %c0_i32_1 = arith.constant 0 : i32
    return %c0_i32, %c0_i32_0 : i32, i32
  }
  func.func @transform_6(%arg0: i32) -> (i32, i32) {
    %c0_i32 = arith.constant 0 : i32
    %c0_i32_0 = arith.constant 0 : i32
    return %arg0, %c0_i32 : i32, i32
  }
}

</mosaic_0001>

<llo_original>
// kernel: tpu_custom_call.1
$region0: #{tpu_custom_call.1}
  #allocation0 [shape = 'u32[]', space=smem, size = 0x4, offset = 0x4, fixed_abs, tag = 'smem constant byte address 0x4 - core index']
  #allocation1 [shape = 'u32[144,128]{1,0:T(1,128)}', space=vmem, size = 0x12000, scoped, tag = 'internal scratch']
  %s0 = inlined_call_operand.hbm [shape: bf16[64,192], index: 0, kind: input, shape index: {}]
  %s1 = inlined_call_operand.hbm [shape: bf16[192,128], index: 1, kind: input, shape index: {}]
  %s2 = inlined_call_operand.hbm [shape: bf16[128,128], index: 2, kind: input, shape index: {}]
  %s3 = inlined_call_operand.hbm [shape: bf16[128,128], index: 3, kind: input, shape index: {}]
  %s4 = inlined_call_operand.hbm [shape: bf16[128,128], index: 4, kind: input, shape index: {}]
  %s5 = inlined_call_operand.vmem [shape: f32[8,128], index: 5, kind: input, shape index: {}]
  %s6 = inlined_call_operand.hbm [shape: f32[64,128], index: 6, kind: output, shape index: {}]
  %s7 = sld [smem:[#allocation0]]
  $region77: #{tpu_custom_call.1} parent=0
    _
  %s9 = ssub.s32 1, %s7
  %s10 = scalar_select 0, %s9, %s7
  $region1: #{tpu_custom_call.1} parent=0
    #allocation2 [shape = 'u8[32768]{0}', space=vmem, size = 0x8000, scoped, tag = 'input window, operand 0']
    #allocation3 [shape = 's32[2]{0}', space=sflag, size = 0x8, scoped, tag = 'scoped memory for tpu_custom_call.1']
    #allocation4 [shape = 's32[2]{0}', space=sflag, size = 0x8, scoped, tag = 'scoped memory for tpu_custom_call.1']
    #allocation5 [shape = 'u8[49152]{0}', space=vmem, size = 0xc000, scoped, tag = 'input window, operand 1, single buffered']
    #allocation6 [shape = 's32[1]{0}', space=sflag, size = 0x4, scoped, tag = 'scoped memory for tpu_custom_call.1']
    #allocation7 [shape = 'u8[32768]{0}', space=vmem, size = 0x8000, scoped, tag = 'input window, operand 2, single buffered']
    #allocation8 [shape = 'u8[32768]{0}', space=vmem, size = 0x8000, scoped, tag = 'input window, operand 3, single buffered']
    #allocation9 [shape = 's32[1]{0}', space=sflag, size = 0x4, scoped, tag = 'scoped memory for tpu_custom_call.1']
    #allocation10 [shape = 'u8[32768]{0}', space=vmem, size = 0x8000, scoped, tag = 'input window, operand 4, single buffered']
    #allocation11 [shape = 'u8[32768]{0}', space=vmem, size = 0x8000, scoped, tag = 'output window, operand 0']
    %11 = vsyncpa [#allocation3], 0
    %s12 = scalar_lea.sflag [#allocation3], 1
    %13 = vsyncpa %s12, 0
    %14 = vsyncpa [#allocation6], 0
    %15 = vsyncpa [#allocation9], 0
    %16 = vsyncpa [#allocation4], 0
    %s17 = scalar_lea.sflag [#allocation4], 1
    %18 = vsyncpa %s17, 0
    loop: start=0, step=1, limit=4
    $region2: #{tpu_custom_call.1} parent=1 // loop_pre_header
      _
    $region3: #{tpu_custom_call.1} parent=1 // loop_header
      %s20 = sphi 0, %s24
      %p21 = scmp.ge.s32.totalorder %s20, 4
      %s30 = sphi 0, %s32
      %s33 = sphi 0, %s30
      %s34 = sphi 0, %s33
      %s50 = sphi 0, %s34
      %s54 = sphi 0, %s54
      %s56 = sphi 0, %s54
      %s57 = sphi 0, %s56
      %s71 = sphi 0, %s57
      %s75 = sphi 0, %s75
      %s77 = sphi 0, %s75
      %s78 = sphi 0, %s77
      %s92 = sphi 0, %s78
      %s96 = sphi 0, %s96
      %s98 = sphi 0, %s96
      %s99 = sphi 0, %s98
      %s113 = sphi 0, %s99
      %s117 = sphi 0, %s117
      %s119 = sphi 0, %s117
      %s120 = sphi 0, %s119
      %s134 = sphi 0, %s120
      %s138 = sphi 0, %s138
      %s140 = sphi 0, %s138
      %s141 = sphi 0, %s140
      %s155 = sphi 0, %s141
      %s161 = sphi 0, %s163
      %s164 = sphi 0, %s161
      %s165 = sphi 0, %s164
      %s181 = sphi 0, %s165
    $region4: #{tpu_custom_call.1} parent=1 // loop_header_branch
      %23 = sbr.rel (%p21) target = $region8
    $region5: #{tpu_custom_call.1} parent=1 // loop_body
      %s25 = ssub.s32 %s20, 1
      %s26 = ssub.s32 %s20, 2
      %s27 = sadd.s32 %s20, 1
      %s28 = ssub.s32 %s20, %s27
      %p29 = scmp.eq.s32.totalorder %s28, 0
      %s31 = sadd.s32 %s30, 1
      %s32 = scalar_select %p29, %s30, %s31
      %p35 = pneg %p29
      %p36 = scmp.eq.s32.totalorder %s20, 1
      %p37 = por %p35, %p36
      %p38 = scmp.ne.s32.totalorder %s30, %s33
      %p39 = scmp.eq.s32.totalorder %s20, 0
      %p40 = por %p38, %p39
      %p41 = scmp.ne.s32.totalorder %s30, %s33
      %p42 = scmp.eq.s32.totalorder %s25, 1
      %p43 = por %p41, %p42
      %p44 = scmp.ne.s32.totalorder %s33, %s34
      %p45 = scmp.eq.s32.totalorder %s25, 0
      %p46 = por %p44, %p45
      %p47 = scmp.ne.s32.totalorder %s33, %s34
      %p48 = scmp.eq.s32.totalorder %s26, 1
      %p49 = por %p47, %p48
      %p51 = scmp.ne.s32.totalorder %s34, %s50
      %p52 = scmp.eq.s32.totalorder %s26, 0
      %p53 = por %p51, %p52
      %s55 = sadd.s32 %s54, 1
      %p58 = scmp.eq.s32.totalorder %s20, 1
      %p59 = scmp.ne.s32.totalorder %s54, %s56
      %p60 = scmp.eq.s32.totalorder %s20, 0
      %p61 = por %p59, %p60
      %p62 = scmp.ne.s32.totalorder %s54, %s56
      %p63 = scmp.eq.s32.totalorder %s25, 1
      %p64 = por %p62, %p63
      %p65 = scmp.ne.s32.totalorder %s56, %s57
      %p66 = scmp.eq.s32.totalorder %s25, 0
      %p67 = por %p65, %p66
      %p68 = scmp.ne.s32.totalorder %s56, %s57
      %p69 = scmp.eq.s32.totalorder %s26, 1
      %p70 = por %p68, %p69
      %p72 = scmp.ne.s32.totalorder %s57, %s71
      %p73 = scmp.eq.s32.totalorder %s26, 0
      %p74 = por %p72, %p73
      %s76 = sadd.s32 %s75, 1
      %p79 = scmp.eq.s32.totalorder %s20, 1
      %p80 = scmp.ne.s32.totalorder %s75, %s77
      %p81 = scmp.eq.s32.totalorder %s20, 0
      %p82 = por %p80, %p81
      %p83 = scmp.ne.s32.totalorder %s75, %s77
      %p84 = scmp.eq.s32.totalorder %s25, 1
      %p85 = por %p83, %p84
      %p86 = scmp.ne.s32.totalorder %s77, %s78
      %p87 = scmp.eq.s32.totalorder %s25, 0
      %p88 = por %p86, %p87
      %p89 = scmp.ne.s32.totalorder %s77, %s78
      %p90 = scmp.eq.s32.totalorder %s26, 1
      %p91 = por %p89, %p90
      %p93 = scmp.ne.s32.totalorder %s78, %s92
      %p94 = scmp.eq.s32.totalorder %s26, 0
      %p95 = por %p93, %p94
      %s97 = sadd.s32 %s96, 1
      %p100 = scmp.eq.s32.totalorder %s20, 1
      %p101 = scmp.ne.s32.totalorder %s96, %s98
      %p102 = scmp.eq.s32.totalorder %s20, 0
      %p103 = por %p101, %p102
      %p104 = scmp.ne.s32.totalorder %s96, %s98
      %p105 = scmp.eq.s32.totalorder %s25, 1
      %p106 = por %p104, %p105
      %p107 = scmp.ne.s32.totalorder %s98, %s99
      %p108 = scmp.eq.s32.totalorder %s25, 0
      %p109 = por %p107, %p108
      %p110 = scmp.ne.s32.totalorder %s98, %s99
      %p111 = scmp.eq.s32.totalorder %s26, 1
      %p112 = por %p110, %p111
      %p114 = scmp.ne.s32.totalorder %s99, %s113
      %p115 = scmp.eq.s32.totalorder %s26, 0
      %p116 = por %p114, %p115
      %s118 = sadd.s32 %s117, 1
      %p121 = scmp.eq.s32.totalorder %s20, 1
      %p122 = scmp.ne.s32.totalorder %s117, %s119
      %p123 = scmp.eq.s32.totalorder %s20, 0
      %p124 = por %p122, %p123
      %p125 = scmp.ne.s32.totalorder %s117, %s119
      %p126 = scmp.eq.s32.totalorder %s25, 1
      %p127 = por %p125, %p126
      %p128 = scmp.ne.s32.totalorder %s119, %s120
      %p129 = scmp.eq.s32.totalorder %s25, 0
      %p130 = por %p128, %p129
      %p131 = scmp.ne.s32.totalorder %s119, %s120
      %p132 = scmp.eq.s32.totalorder %s26, 1
      %p133 = por %p131, %p132
      %p135 = scmp.ne.s32.totalorder %s120, %s134
      %p136 = scmp.eq.s32.totalorder %s26, 0
      %p137 = por %p135, %p136
      %s139 = sadd.s32 %s138, 1
      %p142 = scmp.eq.s32.totalorder %s20, 1
      %p143 = scmp.ne.s32.totalorder %s138, %s140
      %p144 = scmp.eq.s32.totalorder %s20, 0
      %p145 = por %p143, %p144
      %p146 = scmp.ne.s32.totalorder %s138, %s140
      %p147 = scmp.eq.s32.totalorder %s25, 1
      %p148 = por %p146, %p147
      %p149 = scmp.ne.s32.totalorder %s140, %s141
      %p150 = scmp.eq.s32.totalorder %s25, 0
      %p151 = por %p149, %p150
      %p152 = scmp.ne.s32.totalorder %s140, %s141
      %p153 = scmp.eq.s32.totalorder %s26, 1
      %p154 = por %p152, %p153
      %p156 = scmp.ne.s32.totalorder %s141, %s155
      %p157 = scmp.eq.s32.totalorder %s26, 0
      %p158 = por %p156, %p157
      %s159 = ssub.s32 %s20, %s27
      %p160 = scmp.eq.s32.totalorder %s159, 0
      %s162 = sadd.s32 %s161, 1
      %s163 = scalar_select %p160, %s161, %s162
      %p166 = pneg %p160
      %p167 = scmp.eq.s32.totalorder %s20, 1
      %p168 = por %p166, %p167
      %p169 = scmp.ne.s32.totalorder %s161, %s164
      %p170 = scmp.eq.s32.totalorder %s20, 0
      %p171 = por %p169, %p170
      %p172 = scmp.ne.s32.totalorder %s161, %s164
      %p173 = scmp.eq.s32.totalorder %s25, 1
      %p174 = por %p172, %p173
      %p175 = scmp.ne.s32.totalorder %s164, %s165
      %p176 = scmp.eq.s32.totalorder %s25, 0
      %p177 = por %p175, %p176
      %p178 = scmp.ne.s32.totalorder %s164, %s165
      %p179 = scmp.eq.s32.totalorder %s26, 1
      %p180 = por %p178, %p179
      %p182 = scmp.ne.s32.totalorder %s165, %s181
      %p183 = scmp.eq.s32.totalorder %s26, 0
      %p184 = por %p182, %p183
      %p185 = scmp.le.s32.totalorder 1, %s20
      %p186 = scmp.lt.s32.totalorder %s20, 3
      %p187 = pnand %p185, %p186
      %p188 = pneg %p187
      // Predicated region
      $region9: #{tpu_custom_call.1} parent=5 // pred_check
        _
      $region10: #{tpu_custom_call.1} parent=5 // pred_check_branch
        %190 = sbr.rel (%p187) target = $region12
      $region11: #{tpu_custom_call.1} parent=5 // pred_region
        %s191 = ssub.s32 %s20, 1
        // Predicated region
        $region13: #{tpu_custom_call.1} parent=11 // pred_check
          %p192 = pneg %p67
        $region14: #{tpu_custom_call.1} parent=11 // pred_check_branch
          %194 = sbr.rel (%p192) target = $region16
        $region15: #{tpu_custom_call.1} parent=11 // pred_region
          %s196 = ssub.s32 1536, 1536
          %197 = vsyncadd [#allocation6], %s196
          %s198 = sshll.u32 [#allocation5], 4
          %s199 = int_to_ptr.vmem [resolvable:$true] %s198
          %204 = dma.hbm_to_vmem [thread:$0]  %s1, 1536, %s199, [#allocation6], 64, 64, 4
        $region16: #{tpu_custom_call.1} parent=11 // pred_fallthru
          _
        // Predicated region
        $region17: #{tpu_custom_call.1} parent=11 // pred_check
          %p205 = pneg %p88
        $region18: #{tpu_custom_call.1} parent=11 // pred_check_branch
          %207 = sbr.rel (%p205) target = $region20
        $region19: #{tpu_custom_call.1} parent=11 // pred_region
          %s209 = ssub.s32 1024, 1024
          %210 = vsyncadd [#allocation6], %s209
          %s211 = sshll.u32 [#allocation7], 4
          %s212 = int_to_ptr.vmem [resolvable:$true] %s211
          %217 = dma.hbm_to_vmem [thread:$0]  %s2, 1024, %s212, [#allocation6], 64, 64, 4
        $region20: #{tpu_custom_call.1} parent=11 // pred_fallthru
          _
        // Predicated region
        $region21: #{tpu_custom_call.1} parent=11 // pred_check
          %p218 = pneg %p109
        $region22: #{tpu_custom_call.1} parent=11 // pred_check_branch
          %220 = sbr.rel (%p218) target = $region24
        $region23: #{tpu_custom_call.1} parent=11 // pred_region
          %s222 = ssub.s32 1024, 1024
          %223 = vsyncadd [#allocation9], %s222
          %s224 = sshll.u32 [#allocation8], 4
          %s225 = int_to_ptr.vmem [resolvable:$true] %s224
          %230 = dma.hbm_to_vmem [thread:$0]  %s3, 1024, %s225, [#allocation9], 64, 64, 4
        $region24: #{tpu_custom_call.1} parent=11 // pred_fallthru
          _
        // Predicated region
        $region25: #{tpu_custom_call.1} parent=11 // pred_check
          %p231 = pneg %p130
        $region26: #{tpu_custom_call.1} parent=11 // pred_check_branch
          %233 = sbr.rel (%p231) target = $region28
        $region27: #{tpu_custom_call.1} parent=11 // pred_region
          %s235 = ssub.s32 1024, 1024
          %236 = vsyncadd [#allocation9], %s235
          %s237 = sshll.u32 [#allocation10], 4
          %s238 = int_to_ptr.vmem [resolvable:$true] %s237
          %243 = dma.hbm_to_vmem [thread:$0]  %s4, 1024, %s238, [#allocation9], 64, 64, 4
        $region28: #{tpu_custom_call.1} parent=11 // pred_fallthru
          _
        // Predicated region
        $region29: #{tpu_custom_call.1} parent=11 // pred_check
          %p244 = pneg %p151
        $region30: #{tpu_custom_call.1} parent=11 // pred_check_branch
          %246 = sbr.rel (%p244) target = $region32
        $region31: #{tpu_custom_call.1} parent=11 // pred_region
          _
        $region32: #{tpu_custom_call.1} parent=11 // pred_fallthru
          _
      $region12: #{tpu_custom_call.1} parent=5 // pred_fallthru
        _
      %p247 = scmp.lt.s32.totalorder %s20, 2
      // Predicated region
      $region33: #{tpu_custom_call.1} parent=5 // pred_check
        %p248 = pneg %p247
      $region34: #{tpu_custom_call.1} parent=5 // pred_check_branch
        %250 = sbr.rel (%p248) target = $region36
      $region35: #{tpu_custom_call.1} parent=5 // pred_region
        // Predicated region
        $region37: #{tpu_custom_call.1} parent=35 // pred_check
          %p251 = pneg %p40
        $region38: #{tpu_custom_call.1} parent=35 // pred_check_branch
          %253 = sbr.rel (%p251) target = $region40
        $region39: #{tpu_custom_call.1} parent=35 // pred_region
          %s254 = sand.u32 %s30, 1
          %s255 = scalar_lea.sflag [#allocation3], %s254
          %s256 = sand.u32 %s30, 1
          %s257 = smul.addr %s256, 32
          %s258 = scalar_lea.vmem [#allocation2], %s257
          %s259 = smul.u32 4, %s20
          %s261 = ssub.s32 512, 512
          %262 = vsyncadd %s255, %s261
          %s263 = smul.addr %s259, 2
          %s264 = smul.addr %s263, 64
          %s265 = scalar_lea.hbm %s0, %s264
          %s266 = sshll.u32 %s258, 4
          %s267 = int_to_ptr.vmem [resolvable:$true] %s266
          %272 = dma.hbm_to_vmem [thread:$0]  %s265, 512, %s267, %s255, 128, 128, 8
        $region40: #{tpu_custom_call.1} parent=35 // pred_fallthru
          _
      $region36: #{tpu_custom_call.1} parent=5 // pred_fallthru
        _
      %p273 = scmp.le.s32.totalorder 1, %s20
      %p274 = scmp.lt.s32.totalorder %s20, 3
      %p275 = pnand %p273, %p274
      %p276 = pneg %p275
      // Predicated region
      $region41: #{tpu_custom_call.1} parent=5 // pred_check
        _
      $region42: #{tpu_custom_call.1} parent=5 // pred_check_branch
        %278 = sbr.rel (%p275) target = $region44
      $region43: #{tpu_custom_call.1} parent=5 // pred_region
        %s279 = ssub.s32 %s20, 1
        %s280 = sand.u32 %s33, 1
        %s281 = scalar_lea.sflag [#allocation3], %s280
        %s282 = sand.u32 %s33, 1
        %s283 = smul.addr %s282, 32
        %s284 = scalar_lea.vmem [#allocation2], %s283
        // Predicated region
        $region45: #{tpu_custom_call.1} parent=43 // pred_check
          %p285 = pneg %p46
        $region46: #{tpu_custom_call.1} parent=43 // pred_check_branch
          %287 = sbr.rel (%p285) target = $region48
        $region47: #{tpu_custom_call.1} parent=43 // pred_region
          %288 = dma.done %s281, 512
        $region48: #{tpu_custom_call.1} parent=43 // pred_fallthru
          _
        // Predicated region
        $region49: #{tpu_custom_call.1} parent=43 // pred_check
          %p289 = pneg %p67
        $region50: #{tpu_custom_call.1} parent=43 // pred_check_branch
          %291 = sbr.rel (%p289) target = $region52
        $region51: #{tpu_custom_call.1} parent=43 // pred_region
          %292 = dma.done [#allocation6], 1536
        $region52: #{tpu_custom_call.1} parent=43 // pred_fallthru
          _
        // Predicated region
        $region53: #{tpu_custom_call.1} parent=43 // pred_check
          %p293 = pneg %p88
        $region54: #{tpu_custom_call.1} parent=43 // pred_check_branch
          %295 = sbr.rel (%p293) target = $region56
        $region55: #{tpu_custom_call.1} parent=43 // pred_region
          %296 = dma.done [#allocation6], 1024
        $region56: #{tpu_custom_call.1} parent=43 // pred_fallthru
          _
        // Predicated region
        $region57: #{tpu_custom_call.1} parent=43 // pred_check
          %p297 = pneg %p109
        $region58: #{tpu_custom_call.1} parent=43 // pred_check_branch
          %299 = sbr.rel (%p297) target = $region60
        $region59: #{tpu_custom_call.1} parent=43 // pred_region
          %300 = dma.done [#allocation9], 1024
        $region60: #{tpu_custom_call.1} parent=43 // pred_fallthru
          _
        // Predicated region
        $region61: #{tpu_custom_call.1} parent=43 // pred_check
          %p301 = pneg %p130
        $region62: #{tpu_custom_call.1} parent=43 // pred_check_branch
          %303 = sbr.rel (%p301) target = $region64
        $region63: #{tpu_custom_call.1} parent=43 // pred_region
          %304 = dma.done [#allocation9], 1024
        $region64: #{tpu_custom_call.1} parent=43 // pred_fallthru
          _
        %s305 = sand.u32 %s33, 1
        %s306 = scalar_lea.sflag [#allocation3], %s305
        %s307 = sand.u32 %s33, 1
        %s308 = smul.addr %s307, 32
        %s309 = scalar_lea.vmem [#allocation2], %s308
        %p310 = pneg %p46
        %p311 = pneg %p43
        %p312 = pneg %p67
        %p313 = pneg %p64
        %p314 = pneg %p88
        %p315 = pneg %p85
        %p316 = pneg %p109
        %p317 = pneg %p106
        %p318 = pneg %p130
        %p319 = pneg %p127
        %p320 = pneg %p151
        %p321 = pneg %p148
        %p322 = pneg %p177
        %p323 = pneg %p174
        %s324 = sand.u32 %s164, 1
        %s325 = scalar_lea.sflag [#allocation4], %s324
        %s326 = sand.u32 %s164, 1
        %s327 = smul.addr %s326, 32
        %s328 = scalar_lea.vmem [#allocation11], %s327
        %s329 = smul.u32 4, %s25
        %s330 = smul.u32 4, %s25
        %v332 = vld [vmem:[%s5] sm:$0xff]
        %v333 = vld [vmem:[%s284] sm:$0xff]
        %v334 = vld [vmem:[%s284 + $0x8] sm:$0xff]
        %v335 = vld [vmem:[%s284 + $0x10] sm:$0xff]
        %v336 = vld [vmem:[%s284 + $0x18] sm:$0xff]
        %v337 = vld [vmem:[#allocation5] sm:$0xf]
        %v338 = vld [vmem:[#allocation5 + $0x4] sm:$0xf]
        %v339 = vld [vmem:[#allocation5 + $0x8] sm:$0xf]
        %v340 = vld [vmem:[#allocation5 + $0xc] sm:$0xf]
        %v341 = vld [vmem:[#allocation5 + $0x10] sm:$0xf]
        %v342 = vld [vmem:[#allocation5 + $0x14] sm:$0xf]
        %v343 = vld [vmem:[#allocation5 + $0x18] sm:$0xf]
        %v344 = vld [vmem:[#allocation5 + $0x1c] sm:$0xf]
        %v345 = vld [vmem:[#allocation5 + $0x20] sm:$0xf]
        %v346 = vld [vmem:[#allocation5 + $0x24] sm:$0xf]
        %v347 = vld [vmem:[#allocation5 + $0x28] sm:$0xf]
        %v348 = vld [vmem:[#allocation5 + $0x2c] sm:$0xf]
        %v349 = vld [vmem:[#allocation5 + $0x30] sm:$0xf]
        %v350 = vld [vmem:[#allocation5 + $0x34] sm:$0xf]
        %v351 = vld [vmem:[#allocation5 + $0x38] sm:$0xf]
        %v352 = vld [vmem:[#allocation5 + $0x3c] sm:$0xf]
        %v353 = vld [vmem:[#allocation5 + $0x40] sm:$0xf]
        %v354 = vld [vmem:[#allocation5 + $0x44] sm:$0xf]
        %v355 = vld [vmem:[#allocation5 + $0x48] sm:$0xf]
        %v356 = vld [vmem:[#allocation5 + $0x4c] sm:$0xf]
        %v357 = vld [vmem:[#allocation5 + $0x50] sm:$0xf]
        %v358 = vld [vmem:[#allocation5 + $0x54] sm:$0xf]
        %v359 = vld [vmem:[#allocation5 + $0x58] sm:$0xf]
        %v360 = vld [vmem:[#allocation5 + $0x5c] sm:$0xf]
        %v361 = vlaneseq
        %v362 = vshrl.u32 %v361, 7
        %v363 = vsub.s32 0, %v362
        %v364 = vrot.slane %v332, %v363
        %v369 = vunpack.c.l.b16 %v333
        %v370 = vunpack.c.h.b16 %v333
        %v371 = vunpack.c.l.b16 %v334
        %v372 = vunpack.c.h.b16 %v334
        %v373 = vunpack.c.l.b16 %v335
        %v374 = vunpack.c.h.b16 %v335
        %v375 = vunpack.c.l.b16 %v336
        %v376 = vunpack.c.h.b16 %v336
        %v377 = vpack.c.b16 %v371, %v369
        %v378 = vpack.c.b16 %v372, %v370
        %v379 = vpack.c.b16 %v375, %v373
        %v380 = vpack.c.b16 %v376, %v374
        %v407 = vunpack.c.l.b16 %v337
        %v408 = vunpack.c.l.b16 %v338
        %v409 = vunpack.c.l.b16 %v339
        %v410 = vunpack.c.l.b16 %v340
        %v411 = vunpack.c.l.b16 %v341
        %v412 = vunpack.c.l.b16 %v342
        %v413 = vunpack.c.l.b16 %v343
        %v414 = vunpack.c.l.b16 %v344
        %v415 = vunpack.c.l.b16 %v345
        %v416 = vunpack.c.l.b16 %v346
        %v417 = vunpack.c.l.b16 %v347
        %v418 = vunpack.c.l.b16 %v348
        %v419 = vunpack.c.l.b16 %v349
        %v420 = vunpack.c.l.b16 %v350
        %v421 = vunpack.c.l.b16 %v351
        %v422 = vunpack.c.l.b16 %v352
        %v423 = vunpack.c.l.b16 %v353
        %v424 = vunpack.c.l.b16 %v354
        %v425 = vunpack.c.l.b16 %v355
        %v426 = vunpack.c.l.b16 %v356
        %v427 = vunpack.c.l.b16 %v357
        %v428 = vunpack.c.l.b16 %v358
        %v429 = vunpack.c.l.b16 %v359
        %v430 = vunpack.c.l.b16 %v360
        %v431 = vpack.c.b16 %v408, %v407
        %v432 = vpack.c.b16 %v410, %v409
        %v433 = vpack.c.b16 %v412, %v411
        %v434 = vpack.c.b16 %v414, %v413
        %v435 = vpack.c.b16 %v416, %v415
        %v436 = vpack.c.b16 %v418, %v417
        %v437 = vpack.c.b16 %v420, %v419
        %v438 = vpack.c.b16 %v422, %v421
        %v439 = vpack.c.b16 %v424, %v423
        %v440 = vpack.c.b16 %v426, %v425
        %v441 = vpack.c.b16 %v428, %v427
        %v442 = vpack.c.b16 %v430, %v429
        %vm455 = vcmask 523264
        %v457 = vsel %vm455, %v378, 0
        %v460 = vsel %vm455, %v380, 0
        %462 = vmatprep.subr.bf16.mxu0 0
        %463 = vmatpush1.bf16.msra.mxu0 %v431
        %464 = vmatprep.subr.bf16.mxu0 0
        %465 = vmatpush1.bf16.msra.mxu0 %v432
        %466 = vmatprep.subr.bf16.mxu0 0
        %467 = vmatpush1.bf16.msra.mxu0 %v433
        %468 = vmatprep.subr.bf16.mxu0 0
        %469 = vmatpush1.bf16.msra.mxu0 %v434
        %470 = vmatprep.subr.bf16.mxu0 0
        %471 = vmatpush1.bf16.msra.mxu0 %v435
        %472 = vmatprep.subr.bf16.mxu0 0
        %473 = vmatpush1.bf16.msra.mxu0 %v436
        %474 = vmatprep.subr.bf16.mxu0 0
        %475 = vmatpush1.bf16.msra.mxu0 %v437
        %476 = vmatprep.subr.bf16.mxu0 0
        %477 = vmatpush1.bf16.msra.mxu0 %v438
        %478 = vmatprep.subr.bf16.mxu0 0
        %479 = vmatpush1.bf16.msra.mxu0 %v439
        %480 = vmatprep.subr.bf16.mxu0 0
        %481 = vmatpush1.bf16.msra.mxu0 %v440
        %482 = vmatprep.subr.bf16.mxu0 0
        %483 = vmatpush1.bf16.msra.mxu0 %v441
        %484 = vmatprep.subr.bf16.mxu0 0
        %485 = vmatpush1.bf16.msra.mxu0 %v442
        %486 = vmatprep.subr.bf16.mxu0 0
        %487 = vmatpush1.bf16.msra.mxu0 0
        %488 = vmatprep.subr.bf16.mxu0 0
        %489 = vmatpush1.bf16.msra.mxu0 0
        %490 = vmatprep.subr.bf16.mxu0 0
        %491 = vmatpush1.bf16.msra.mxu0 0
        %492 = vmatprep.subr.bf16.mxu0 0
        %493 = vmatpush1.bf16.msra.mxu0 0
        %494 = vmatprep.mubr.bf16.mxu0 %v457
        %495 = vmatmul.mubr.bf16.gmra.mrb[0].mxu0 %v377
        %v496 = vpop.f32.mrb[0].mxu0
        %v497 = vadd.f32 %v364, %v496
        %v498 = vpop.f32.mrb[0].mxu0
        %v499 = vpop.f32.mrb[0].mxu0
        %v500 = vadd.f32 %v364, %v499
        %v501 = vpop.f32.mrb[0].mxu0
        %502 = vmatprep.mubr.bf16.mxu0 %v460
        %503 = vmatmul.mubr.bf16.gmra.mrb[0].mxu0 %v379
        %v504 = vpop.f32.mrb[0].mxu0
        %v505 = vadd.f32 %v364, %v504
        %v506 = vpop.f32.mrb[0].mxu0
        %v507 = vpop.f32.mrb[0].mxu0
        %v508 = vadd.f32 %v364, %v507
        %v509 = vpop.f32.mrb[0].mxu0
        %510 = vdwg.mxu0
        %v511 = vmax.f32 %v497, 0.0
        %v512 = vmax.f32 %v500, 0.0
        %v513 = vmax.f32 %v505, 0.0
        %v514 = vmax.f32 %v508, 0.0
        %v515 = vpack.c.bf16 %v512, %v511
        %v516 = vpack.c.bf16 %v514, %v513
        %v517 = vld [vmem:[#allocation7] sm:$0xf]
        %v518 = vld [vmem:[#allocation7 + $0x4] sm:$0xf]
        %v519 = vld [vmem:[#allocation7 + $0x8] sm:$0xf]
        %v520 = vld [vmem:[#allocation7 + $0xc] sm:$0xf]
        %v521 = vld [vmem:[#allocation7 + $0x10] sm:$0xf]
        %v522 = vld [vmem:[#allocation7 + $0x14] sm:$0xf]
        %v523 = vld [vmem:[#allocation7 + $0x18] sm:$0xf]
        %v524 = vld [vmem:[#allocation7 + $0x1c] sm:$0xf]
        %v525 = vld [vmem:[#allocation7 + $0x20] sm:$0xf]
        %v526 = vld [vmem:[#allocation7 + $0x24] sm:$0xf]
        %v527 = vld [vmem:[#allocation7 + $0x28] sm:$0xf]
        %v528 = vld [vmem:[#allocation7 + $0x2c] sm:$0xf]
        %v529 = vld [vmem:[#allocation7 + $0x30] sm:$0xf]
        %v530 = vld [vmem:[#allocation7 + $0x34] sm:$0xf]
        %v531 = vld [vmem:[#allocation7 + $0x38] sm:$0xf]
        %v532 = vld [vmem:[#allocation7 + $0x3c] sm:$0xf]
        %v533 = vlaneseq
        %v534 = vshrl.u32 %v533, 7
        %v535 = vsub.s32 1, %v534
        %v536 = vrot.slane %v332, %v535
        %v553 = vunpack.c.l.b16 %v517
        %v554 = vunpack.c.l.b16 %v518
        %v555 = vunpack.c.l.b16 %v519
        %v556 = vunpack.c.l.b16 %v520
        %v557 = vunpack.c.l.b16 %v521
        %v558 = vunpack.c.l.b16 %v522
        %v559 = vunpack.c.l.b16 %v523
        %v560 = vunpack.c.l.b16 %v524
        %v561 = vunpack.c.l.b16 %v525
        %v562 = vunpack.c.l.b16 %v526
        %v563 = vunpack.c.l.b16 %v527
        %v564 = vunpack.c.l.b16 %v528
        %v565 = vunpack.c.l.b16 %v529
        %v566 = vunpack.c.l.b16 %v530
        %v567 = vunpack.c.l.b16 %v531
        %v568 = vunpack.c.l.b16 %v532
        %v569 = vpack.c.b16 %v554, %v553
        %v570 = vpack.c.b16 %v556, %v555
        %v571 = vpack.c.b16 %v558, %v557
        %v572 = vpack.c.b16 %v560, %v559
        %v573 = vpack.c.b16 %v562, %v561
        %v574 = vpack.c.b16 %v564, %v563
        %v575 = vpack.c.b16 %v566, %v565
        %v576 = vpack.c.b16 %v568, %v567
        %585 = vmatprep.subr.bf16.mxu0 0
        %586 = vmatpush1.bf16.msra.mxu0 %v569
        %587 = vmatprep.subr.bf16.mxu0 0
        %588 = vmatpush1.bf16.msra.mxu0 %v570
        %589 = vmatprep.subr.bf16.mxu0 0
        %590 = vmatpush1.bf16.msra.mxu0 %v571
        %591 = vmatprep.subr.bf16.mxu0 0
        %592 = vmatpush1.bf16.msra.mxu0 %v572
        %593 = vmatprep.subr.bf16.mxu0 0
        %594 = vmatpush1.bf16.msra.mxu0 %v573
        %595 = vmatprep.subr.bf16.mxu0 0
        %596 = vmatpush1.bf16.msra.mxu0 %v574
        %597 = vmatprep.subr.bf16.mxu0 0
        %598 = vmatpush1.bf16.msra.mxu0 %v575
        %599 = vmatprep.subr.bf16.mxu0 0
        %600 = vmatpush1.bf16.msra.mxu0 %v576
        %601 = vmatprep.subr.bf16.mxu0 0
        %602 = vmatpush1.bf16.msra.mxu0 0
        %603 = vmatprep.subr.bf16.mxu0 0
        %604 = vmatpush1.bf16.msra.mxu0 0
        %605 = vmatprep.subr.bf16.mxu0 0
        %606 = vmatpush1.bf16.msra.mxu0 0
        %607 = vmatprep.subr.bf16.mxu0 0
        %608 = vmatpush1.bf16.msra.mxu0 0
        %609 = vmatprep.subr.bf16.mxu0 0
        %610 = vmatpush1.bf16.msra.mxu0 0
        %611 = vmatprep.subr.bf16.mxu0 0
        %612 = vmatpush1.bf16.msra.mxu0 0
        %613 = vmatprep.subr.bf16.mxu0 0
        %614 = vmatpush1.bf16.msra.mxu0 0
        %615 = vmatprep.subr.bf16.mxu0 0
        %616 = vmatpush1.bf16.msra.mxu0 0
        %617 = vmatprep.mubr.bf16.mxu0 0
        %618 = vmatmul.mubr.bf16.gmra.mrb[0].mxu0 %v515
        %v619 = vpop.f32.mrb[0].mxu0
        %v620 = vadd.f32 %v536, %v619
        %v621 = vpop.f32.mrb[0].mxu0
        %v622 = vpop.f32.mrb[0].mxu0
        %v623 = vadd.f32 %v536, %v622
        %v624 = vpop.f32.mrb[0].mxu0
        %625 = vmatprep.mubr.bf16.mxu0 0
        %626 = vmatmul.mubr.bf16.gmra.mrb[0].mxu0 %v516
        %v627 = vpop.f32.mrb[0].mxu0
        %v628 = vadd.f32 %v536, %v627
        %v629 = vpop.f32.mrb[0].mxu0
        %v630 = vpop.f32.mrb[0].mxu0
        %v631 = vadd.f32 %v536, %v630
        %v632 = vpop.f32.mrb[0].mxu0
        %633 = vdwg.mxu0
        %v634 = vmax.f32 %v620, 0.0
        %v635 = vmax.f32 %v623, 0.0
        %v636 = vmax.f32 %v628, 0.0
        %v637 = vmax.f32 %v631, 0.0
        %v638 = vpack.c.bf16 %v635, %v634
        %v639 = vpack.c.bf16 %v637, %v636
        %v640 = vld [vmem:[#allocation8] sm:$0xf]
        %v641 = vld [vmem:[#allocation8 + $0x4] sm:$0xf]
        %v642 = vld [vmem:[#allocation8 + $0x8] sm:$0xf]
        %v643 = vld [vmem:[#allocation8 + $0xc] sm:$0xf]
        %v644 = vld [vmem:[#allocation8 + $0x10] sm:$0xf]
        %v645 = vld [vmem:[#allocation8 + $0x14] sm:$0xf]
        %v646 = vld [vmem:[#allocation8 + $0x18] sm:$0xf]
        %v647 = vld [vmem:[#allocation8 + $0x1c] sm:$0xf]
        %v648 = vld [vmem:[#allocation8 + $0x20] sm:$0xf]
        %v649 = vld [vmem:[#allocation8 + $0x24] sm:$0xf]
        %v650 = vld [vmem:[#allocation8 + $0x28] sm:$0xf]
        %v651 = vld [vmem:[#allocation8 + $0x2c] sm:$0xf]
        %v652 = vld [vmem:[#allocation8 + $0x30] sm:$0xf]
        %v653 = vld [vmem:[#allocation8 + $0x34] sm:$0xf]
        %v654 = vld [vmem:[#allocation8 + $0x38] sm:$0xf]
        %v655 = vld [vmem:[#allocation8 + $0x3c] sm:$0xf]
        %v656 = vlaneseq
        %v657 = vshrl.u32 %v656, 7
        %v658 = vsub.s32 2, %v657
        %v659 = vrot.slane %v332, %v658
        %v676 = vunpack.c.l.b16 %v640
        %v677 = vunpack.c.l.b16 %v641
        %v678 = vunpack.c.l.b16 %v642
        %v679 = vunpack.c.l.b16 %v643
        %v680 = vunpack.c.l.b16 %v644
        %v681 = vunpack.c.l.b16 %v645
        %v682 = vunpack.c.l.b16 %v646
        %v683 = vunpack.c.l.b16 %v647
        %v684 = vunpack.c.l.b16 %v648
        %v685 = vunpack.c.l.b16 %v649
        %v686 = vunpack.c.l.b16 %v650
        %v687 = vunpack.c.l.b16 %v651
        %v688 = vunpack.c.l.b16 %v652
        %v689 = vunpack.c.l.b16 %v653
        %v690 = vunpack.c.l.b16 %v654
        %v691 = vunpack.c.l.b16 %v655
        %v692 = vpack.c.b16 %v677, %v676
        %v693 = vpack.c.b16 %v679, %v678
        %v694 = vpack.c.b16 %v681, %v680
        %v695 = vpack.c.b16 %v683, %v682
        %v696 = vpack.c.b16 %v685, %v684
        %v697 = vpack.c.b16 %v687, %v686
        %v698 = vpack.c.b16 %v689, %v688
        %v699 = vpack.c.b16 %v691, %v690
        %708 = vmatprep.subr.bf16.mxu0 0
        %709 = vmatpush1.bf16.msra.mxu0 %v692
        %710 = vmatprep.subr.bf16.mxu0 0
        %711 = vmatpush1.bf16.msra.mxu0 %v693
        %712 = vmatprep.subr.bf16.mxu0 0
        %713 = vmatpush1.bf16.msra.mxu0 %v694
        %714 = vmatprep.subr.bf16.mxu0 0
        %715 = vmatpush1.bf16.msra.mxu0 %v695
        %716 = vmatprep.subr.bf16.mxu0 0
        %717 = vmatpush1.bf16.msra.mxu0 %v696
        %718 = vmatprep.subr.bf16.mxu0 0
        %719 = vmatpush1.bf16.msra.mxu0 %v697
        %720 = vmatprep.subr.bf16.mxu0 0
        %721 = vmatpush1.bf16.msra.mxu0 %v698
        %722 = vmatprep.subr.bf16.mxu0 0
        %723 = vmatpush1.bf16.msra.mxu0 %v699
        %724 = vmatprep.subr.bf16.mxu0 0
        %725 = vmatpush1.bf16.msra.mxu0 0
        %726 = vmatprep.subr.bf16.mxu0 0
        %727 = vmatpush1.bf16.msra.mxu0 0
        %728 = vmatprep.subr.bf16.mxu0 0
        %729 = vmatpush1.bf16.msra.mxu0 0
        %730 = vmatprep.subr.bf16.mxu0 0
        %731 = vmatpush1.bf16.msra.mxu0 0
        %732 = vmatprep.subr.bf16.mxu0 0
        %733 = vmatpush1.bf16.msra.mxu0 0
        %734 = vmatprep.subr.bf16.mxu0 0
        %735 = vmatpush1.bf16.msra.mxu0 0
        %736 = vmatprep.subr.bf16.mxu0 0
        %737 = vmatpush1.bf16.msra.mxu0 0
        %738 = vmatprep.subr.bf16.mxu0 0
        %739 = vmatpush1.bf16.msra.mxu0 0
        %740 = vmatprep.mubr.bf16.mxu0 0
        %741 = vmatmul.mubr.bf16.gmra.mrb[0].mxu0 %v638
        %v742 = vpop.f32.mrb[0].mxu0
        %v743 = vadd.f32 %v659, %v742
        %v744 = vpop.f32.mrb[0].mxu0
        %v745 = vpop.f32.mrb[0].mxu0
        %v746 = vadd.f32 %v659, %v745
        %v747 = vpop.f32.mrb[0].mxu0
        %748 = vmatprep.mubr.bf16.mxu0 0
        %749 = vmatmul.mubr.bf16.gmra.mrb[0].mxu0 %v639
        %v750 = vpop.f32.mrb[0].mxu0
        %v751 = vadd.f32 %v659, %v750
        %v752 = vpop.f32.mrb[0].mxu0
        %v753 = vpop.f32.mrb[0].mxu0
        %v754 = vadd.f32 %v659, %v753
        %v755 = vpop.f32.mrb[0].mxu0
        %756 = vdwg.mxu0
        %v757 = vmax.f32 %v743, 0.0
        %v758 = vmax.f32 %v746, 0.0
        %v759 = vmax.f32 %v751, 0.0
        %v760 = vmax.f32 %v754, 0.0
        %v761 = vpack.c.bf16 %v758, %v757
        %v762 = vpack.c.bf16 %v760, %v759
        %v763 = vld [vmem:[#allocation10] sm:$0xf]
        %v764 = vld [vmem:[#allocation10 + $0x4] sm:$0xf]
        %v765 = vld [vmem:[#allocation10 + $0x8] sm:$0xf]
        %v766 = vld [vmem:[#allocation10 + $0xc] sm:$0xf]
        %v767 = vld [vmem:[#allocation10 + $0x10] sm:$0xf]
        %v768 = vld [vmem:[#allocation10 + $0x14] sm:$0xf]
        %v769 = vld [vmem:[#allocation10 + $0x18] sm:$0xf]
        %v770 = vld [vmem:[#allocation10 + $0x1c] sm:$0xf]
        %v771 = vld [vmem:[#allocation10 + $0x20] sm:$0xf]
        %v772 = vld [vmem:[#allocation10 + $0x24] sm:$0xf]
        %v773 = vld [vmem:[#allocation10 + $0x28] sm:$0xf]
        %v774 = vld [vmem:[#allocation10 + $0x2c] sm:$0xf]
        %v775 = vld [vmem:[#allocation10 + $0x30] sm:$0xf]
        %v776 = vld [vmem:[#allocation10 + $0x34] sm:$0xf]
        %v777 = vld [vmem:[#allocation10 + $0x38] sm:$0xf]
        %v778 = vld [vmem:[#allocation10 + $0x3c] sm:$0xf]
        %v779 = vlaneseq
        %v780 = vshrl.u32 %v779, 7
        %v781 = vsub.s32 3, %v780
        %v782 = vrot.slane %v332, %v781
        %v799 = vunpack.c.l.b16 %v763
        %v800 = vunpack.c.l.b16 %v764
        %v801 = vunpack.c.l.b16 %v765
        %v802 = vunpack.c.l.b16 %v766
        %v803 = vunpack.c.l.b16 %v767
        %v804 = vunpack.c.l.b16 %v768
        %v805 = vunpack.c.l.b16 %v769
        %v806 = vunpack.c.l.b16 %v770
        %v807 = vunpack.c.l.b16 %v771
        %v808 = vunpack.c.l.b16 %v772
        %v809 = vunpack.c.l.b16 %v773
        %v810 = vunpack.c.l.b16 %v774
        %v811 = vunpack.c.l.b16 %v775
        %v812 = vunpack.c.l.b16 %v776
        %v813 = vunpack.c.l.b16 %v777
        %v814 = vunpack.c.l.b16 %v778
        %v815 = vpack.c.b16 %v800, %v799
        %v816 = vpack.c.b16 %v802, %v801
        %v817 = vpack.c.b16 %v804, %v803
        %v818 = vpack.c.b16 %v806, %v805
        %v819 = vpack.c.b16 %v808, %v807
        %v820 = vpack.c.b16 %v810, %v809
        %v821 = vpack.c.b16 %v812, %v811
        %v822 = vpack.c.b16 %v814, %v813
        %831 = vmatprep.subr.bf16.mxu0 0
        %832 = vmatpush1.bf16.msra.mxu0 %v815
        %833 = vmatprep.subr.bf16.mxu0 0
        %834 = vmatpush1.bf16.msra.mxu0 %v816
        %835 = vmatprep.subr.bf16.mxu0 0
        %836 = vmatpush1.bf16.msra.mxu0 %v817
        %837 = vmatprep.subr.bf16.mxu0 0
        %838 = vmatpush1.bf16.msra.mxu0 %v818
        %839 = vmatprep.subr.bf16.mxu0 0
        %840 = vmatpush1.bf16.msra.mxu0 %v819
        %841 = vmatprep.subr.bf16.mxu0 0
        %842 = vmatpush1.bf16.msra.mxu0 %v820
        %843 = vmatprep.subr.bf16.mxu0 0
        %844 = vmatpush1.bf16.msra.mxu0 %v821
        %845 = vmatprep.subr.bf16.mxu0 0
        %846 = vmatpush1.bf16.msra.mxu0 %v822
        %847 = vmatprep.subr.bf16.mxu0 0
        %848 = vmatpush1.bf16.msra.mxu0 0
        %849 = vmatprep.subr.bf16.mxu0 0
        %850 = vmatpush1.bf16.msra.mxu0 0
        %851 = vmatprep.subr.bf16.mxu0 0
        %852 = vmatpush1.bf16.msra.mxu0 0
        %853 = vmatprep.subr.bf16.mxu0 0
        %854 = vmatpush1.bf16.msra.mxu0 0
        %855 = vmatprep.subr.bf16.mxu0 0
        %856 = vmatpush1.bf16.msra.mxu0 0
        %857 = vmatprep.subr.bf16.mxu0 0
        %858 = vmatpush1.bf16.msra.mxu0 0
        %859 = vmatprep.subr.bf16.mxu0 0
        %860 = vmatpush1.bf16.msra.mxu0 0
        %861 = vmatprep.subr.bf16.mxu0 0
        %862 = vmatpush1.bf16.msra.mxu0 0
        %863 = vmatprep.mubr.bf16.mxu0 0
        %864 = vmatmul.mubr.bf16.gmra.mrb[0].mxu0 %v761
        %v865 = vpop.f32.mrb[0].mxu0
        %v866 = vadd.f32 %v782, %v865
        %v867 = vpop.f32.mrb[0].mxu0
        %v868 = vpop.f32.mrb[0].mxu0
        %v869 = vadd.f32 %v782, %v868
        %v870 = vpop.f32.mrb[0].mxu0
        %871 = vmatprep.mubr.bf16.mxu0 0
        %872 = vmatmul.mubr.bf16.gmra.mrb[0].mxu0 %v762
        %v873 = vpop.f32.mrb[0].mxu0
        %v874 = vadd.f32 %v782, %v873
        %v875 = vpop.f32.mrb[0].mxu0
        %v876 = vpop.f32.mrb[0].mxu0
        %v877 = vadd.f32 %v782, %v876
        %v878 = vpop.f32.mrb[0].mxu0
        %879 = vdwg.mxu0
        %880 = vst [vmem:[%s328] sm:$0xff] %v866
        %881 = vst [vmem:[%s328 + $0x8] sm:$0xff] %v869
        %882 = vst [vmem:[%s328 + $0x10] sm:$0xff] %v874
        %883 = vst [vmem:[%s328 + $0x18] sm:$0xff] %v877
        %s884 = sand.u32 %s164, 1
        %s885 = scalar_lea.sflag [#allocation4], %s884
        %s886 = sand.u32 %s164, 1
        %s887 = smul.addr %s886, 32
        %s888 = scalar_lea.vmem [#allocation11], %s887
        // Predicated region
        $region65: #{tpu_custom_call.1} parent=43 // pred_check
          %p889 = pneg %p174
        $region66: #{tpu_custom_call.1} parent=43 // pred_check_branch
          %891 = sbr.rel (%p889) target = $region68
        $region67: #{tpu_custom_call.1} parent=43 // pred_region
          %s892 = smul.u32 4, %s25
          %s894 = ssub.s32 512, 512
          %895 = vsyncadd %s885, %s894
          %s896 = smul.addr %s892, 128
          %s897 = scalar_lea.hbm %s6, %s896
          %s898 = sshll.u32 %s888, 4
          %s899 = int_to_ptr.vmem [resolvable:$true] %s898
          %904 = dma.vmem_to_hbm [thread:$0]  %s899, 512, %s897, %s885, 128, 128, 8
        $region68: #{tpu_custom_call.1} parent=43 // pred_fallthru
          _
      $region44: #{tpu_custom_call.1} parent=5 // pred_fallthru
        _
      %p905 = scmp.le.s32.totalorder 2, %s20
      // Predicated region
      $region69: #{tpu_custom_call.1} parent=5 // pred_check
        %p906 = pneg %p905
      $region70: #{tpu_custom_call.1} parent=5 // pred_check_branch
        %908 = sbr.rel (%p906) target = $region72
      $region71: #{tpu_custom_call.1} parent=5 // pred_region
        %s909 = ssub.s32 %s20, 2
        // Predicated region
        $region73: #{tpu_custom_call.1} parent=71 // pred_check
          %p910 = pneg %p180
        $region74: #{tpu_custom_call.1} parent=71 // pred_check_branch
          %912 = sbr.rel (%p910) target = $region76
        $region75: #{tpu_custom_call.1} parent=71 // pred_region
          %s913 = sand.u32 %s165, 1
          %s914 = scalar_lea.sflag [#allocation4], %s913
          %s915 = sand.u32 %s165, 1
          %s916 = smul.addr %s915, 32
          %s917 = scalar_lea.vmem [#allocation11], %s916
          %918 = dma.done %s914, 512
        $region76: #{tpu_custom_call.1} parent=71 // pred_fallthru
          _
      $region72: #{tpu_custom_call.1} parent=5 // pred_fallthru
        _
    $region6: #{tpu_custom_call.1} parent=1 // loop_footer
      %s24 = sadd.s32 1, %s20
    $region7: #{tpu_custom_call.1} parent=1 // loop_footer_branch
      %19 = sbr.rel target = $region3
    $region8: #{tpu_custom_call.1} parent=1 // loop_exit
      _
    %919 = vsyncpa [#allocation3], 1
    %s920 = scalar_lea.sflag [#allocation3], 1
    %921 = vsyncpa %s920, 1
    %922 = vsyncpa [#allocation6], 1
    %923 = vsyncpa [#allocation9], 1
    %924 = vsyncpa [#allocation4], 1
    %s925 = scalar_lea.sflag [#allocation4], 1
    %926 = vsyncpa %s925, 1

</llo_original>
